<compile_context>
chip_gen: v7x
topology: tpu7x:2x2x1
jax: 0.10.0
libtpu: 0.0.40
codegen_flags: <defaults>
</compile_context>

<pallas_src>
import functools
import math

import jax
import jax.numpy as jnp
from jax.experimental import pallas as pl
from jax.experimental.pallas import tpu as pltpu


def head_kernel(x_ref, e_ref, m_ref, w_ref, b_ref, o_ref, *, eps, seq_len, ragged):
    """One (1, TL, C) tile of one batch element -> (1, TL, O_pad) output tile."""
    tl = x_ref.shape[1]
    c = x_ref.shape[2]

    x = x_ref[0].astype(jnp.float32)                       # (TL, C), f32 stats
    if ragged:
        # Last L-tile is partial: zero rows >= L so LN stays finite. Those rows are
        # discarded by the bounded output writeback anyway.
        row = (jax.lax.broadcasted_iota(jnp.int32, (tl, 1), 0)
               + pl.program_id(0) * tl)
        x = jnp.where(row < seq_len, x, 0.0)

    # LayerNorm statistics, single pass (biased variance, PyTorch semantics).
    # Strictly f32; variance clamped against cancellation.
    inv_c = 1.0 / c
    mu = jnp.sum(x, axis=-1, keepdims=True) * inv_c         # (TL, 1)
    ex2 = jnp.sum(x * x, axis=-1, keepdims=True) * inv_c    # (TL, 1)
    var = jnp.maximum(ex2 - mu * mu, 0.0)
    rstd = jax.lax.rsqrt(var + eps)                         # (TL, 1)

    # get_mod (e.dim() == 2): e0 = modulation[:,0] + e, e1 = modulation[:,1] + e.
    ev = e_ref[0].astype(jnp.float32)                       # (1, C)
    mod = m_ref[0].astype(jnp.float32)                      # (2, C)
    e0 = mod[0:1, :] + ev                                   # (1, C)
    e1 = mod[1:2, :] + ev                                   # (1, C)

    # norm(x) * (1 + e1) + e0, fused into one elementwise chain (f32, VPU).
    h = (x - mu) * (rstd * (1.0 + e1)) + e0                 # (TL, C)

    # Linear head on the MXU: bf16 operands, f32 accumulation, f32 bias.
    y = jnp.dot(h.astype(w_ref.dtype), w_ref[...],
                preferred_element_type=jnp.float32)         # (TL, O_pad)
    y = y + b_ref[...]
    o_ref[0] = y.astype(o_ref.dtype)


def prepare_head_params(w_t, bias, *, compute_dtype=jnp.bfloat16):
    """Once-per-model parameter prep (hoisted out of the hot path).

    w_t:  (C, O) = torch Linear weight transposed; bias: (O,).
    Returns (w_pad (C, O_pad) in compute_dtype, b_pad (1, O_pad) f32, O).
    O is zero-padded to a multiple of 128 so the kernel output is lane-dense
    (unmasked vst); the padded columns are exactly zero.
    """
    c, o = w_t.shape
    o_pad = -(-o // 128) * 128
    w_pad = (jnp.zeros((c, o_pad), compute_dtype)
             .at[:, :o].set(w_t.astype(compute_dtype)))
    b_pad = (jnp.zeros((1, o_pad), jnp.float32)
             .at[0, :o].set(bias.astype(jnp.float32)))
    return w_pad, b_pad, o


def head_forward(x, e, modulation, w_pad, b_pad, out_features, *, eps=1e-6,
                 tl=None, vmem_limit_bytes=None, out_dtype=None,
                 slice_output=True):
    """x: (B, L, C); e: (B, C); modulation: (1, 2, C);
    w_pad / b_pad / out_features from prepare_head_params.
    Returns (B, L, out_features); with slice_output=False returns the padded
    (B, L, O_pad) buffer so the caller can fuse the slice into unpatchify."""
    B, L, C = x.shape
    O_pad = w_pad.shape[1]
    if out_dtype is None:
        out_dtype = x.dtype

    # TODO(synk): get_mod's e.dim()==3 (per-token modulation) branch is not
    # implemented; forward() spec uses e of shape [B, C].

    # Generation-aware tile / scoped-VMEM budget: 128 MiB parts (v5e/v6e) run TL=512
    # with ~100 MiB; 64 MiB parts (v7x) drop to TL=256 / 56 MiB.
    try:
        vmem_cap = int(pltpu.get_tpu_info().vmem_capacity_bytes)
    except Exception:
        vmem_cap = 128 * 1024 * 1024
    if tl is None:
        tl = 512 if vmem_cap >= (96 << 20) else 256
    if vmem_limit_bytes is None:
        vmem_limit_bytes = min(vmem_cap - (8 << 20), 100 << 20)

    if tl >= L:
        TL = L                                  # full-extent block: any L is legal
        ragged = False
    else:
        TL = max(16, (tl // 16) * 16)           # bf16-friendly sublane packing
        ragged = (L % TL) != 0
    n_l = pl.cdiv(L, TL)

    e3 = e.reshape(B, 1, C)                     # metadata-only reshape

    kernel = functools.partial(head_kernel, eps=eps, seq_len=L, ragged=ragged)

    x_bytes = jnp.dtype(x.dtype).itemsize
    o_bytes = jnp.dtype(out_dtype).itemsize
    w_bytes = jnp.dtype(w_pad.dtype).itemsize
    cost = pl.CostEstimate(
        flops=2 * B * L * C * O_pad,
        transcendentals=B * L,                  # one rsqrt per row
        bytes_accessed=(B * L * C * x_bytes + B * L * O_pad * o_bytes
                        + C * O_pad * w_bytes))

    single = pl.Buffered(1)                     # grid-invariant operands: 1 buffer

    out = pl.pallas_call(
        kernel,
        out_shape=jax.ShapeDtypeStruct((B, L, O_pad), out_dtype),
        grid=(n_l, B),   # L-tile axis leads -> megacore shards the long axis (v7x, B==1)
        in_specs=[
            pl.BlockSpec((1, TL, C), lambda l, b: (b, l, 0)),                       # x tile
            pl.BlockSpec((1, 1, C), lambda l, b: (b, 0, 0)),                        # e row
            pl.BlockSpec((1, 2, C), lambda l, b: (0, 0, 0), pipeline_mode=single),  # modulation
            pl.BlockSpec((C, O_pad), lambda l, b: (0, 0), pipeline_mode=single),    # weight
            pl.BlockSpec((1, O_pad), lambda l, b: (0, 0), pipeline_mode=single),    # bias
        ],
        out_specs=pl.BlockSpec((1, TL, O_pad), lambda l, b: (b, l, 0)),
        compiler_params=pltpu.CompilerParams(
            dimension_semantics=("parallel", "parallel"),
            vmem_limit_bytes=int(vmem_limit_bytes)),
        cost_estimate=cost,
    )(x, e3, modulation, w_pad, b_pad)

    if slice_output and O_pad != out_features:
        out = out[..., :out_features]
    return out


def reference_forward(x, e, modulation, w_t, bias, *, eps=1e-6,
                      compute_dtype=jnp.bfloat16, out_dtype=None):
    """Pure-JAX reference matching the kernel's math (f32 LN, bf16 dot, f32 acc)."""
    if out_dtype is None:
        out_dtype = x.dtype
    x32 = x.astype(jnp.float32)
    mu = jnp.mean(x32, axis=-1, keepdims=True)
    var = jnp.mean((x32 - mu) ** 2, axis=-1, keepdims=True)
    xn = (x32 - mu) * jax.lax.rsqrt(var + eps)
    em = e[:, None, :].astype(jnp.float32) + modulation.astype(jnp.float32)
    e0, e1 = em[:, 0:1, :], em[:, 1:2, :]
    h = xn * (1.0 + e1) + e0
    y = jnp.dot(h.astype(compute_dtype), w_t.astype(compute_dtype),
                preferred_element_type=jnp.float32) + bias.astype(jnp.float32)
    return y.astype(out_dtype)


if __name__ == "__main__":
    # Small shapes consistent with the module; L chosen to exercise tiling + ragged tail.
    B, L, C = 2, 24, 32                      # dim = C = 32
    patch_size = (1, 2, 2)
    out_dim = 4
    O = math.prod(patch_size) * out_dim      # 16

    key = jax.random.PRNGKey(0)
    kx, ke, km, kw, kb = jax.random.split(key, 5)

    # Activations in bf16 (halves the dominant HBM stream); small params in f32.
    x = jax.random.normal(kx, (B, L, C), dtype=jnp.float32).astype(jnp.bfloat16)
    e = jax.random.normal(ke, (B, C), dtype=jnp.float32)

    # Parameters per Head.__init__ (deterministic init).
    modulation = jax.random.normal(km, (1, 2, C), dtype=jnp.float32) / (C ** 0.5)
    bound = 1.0 / (C ** 0.5)
    w_t = jax.random.uniform(kw, (C, O), jnp.float32, -bound, bound)  # Linear weight^T
    bias = jax.random.uniform(kb, (O,), jnp.float32, -bound, bound)

    w_pad, b_pad, o_feat = prepare_head_params(w_t, bias)
    ref = reference_forward(x, e, modulation, w_t, bias, eps=1e-6)

    # 1) Tiled + ragged-tail path (TL=16 < L=24; last tile masked in-kernel).
    out_tiled = head_forward(x, e, modulation, w_pad, b_pad, o_feat, eps=1e-6, tl=16)
    out_tiled = jax.block_until_ready(out_tiled)

    # 2) Default path (generation-derived TL >= L -> one full-extent block per batch).
    out_full = head_forward(x, e, modulation, w_pad, b_pad, o_feat, eps=1e-6)
    out_full = jax.block_until_ready(out_full)

    assert out_tiled.shape == (B, L, O) and out_full.shape == (B, L, O)
    assert out_tiled.dtype == x.dtype
    for out in (out_tiled, out_full):
        err = float(jnp.max(jnp.abs(out.astype(jnp.float32) - ref.astype(jnp.float32))))
        assert err < 3e-2, err

    print("KERNEL_OK")
</pallas_src>

<mosaic_0001>
module attributes {stable_mosaic.version = 11 : i64} {
  func.func @head_kernel(%arg0: i32, %arg1: i32, %arg2: memref<1x16x32xbf16, #tpu.memory_space<vmem>>, %arg3: memref<1x1x32xf32, #tpu.memory_space<vmem>>, %arg4: memref<1x2x32xf32, #tpu.memory_space<vmem>>, %arg5: memref<32x128xbf16, #tpu.memory_space<vmem>>, %arg6: memref<1x128xf32, #tpu.memory_space<vmem>>, %arg7: memref<1x16x128xbf16, #tpu.memory_space<vmem>>) attributes {dimension_semantics = [#tpu.dimension_semantics<parallel>, #tpu.dimension_semantics<parallel>], iteration_bounds = array<i64: 2, 2>, scalar_prefetch = 0 : i64, scratch_operands = 0 : i64, tpu.core_type = #tpu.core_type<tc>, window_params = [{transform_indices = @transform_0, window_bounds = array<i64: 1, 16, 32>}, {transform_indices = @transform_1, window_bounds = array<i64: 1, 1, 32>}, {pipeline_mode = #tpu.pipeline_mode<synchronous>, transform_indices = @transform_2, window_bounds = array<i64: 1, 2, 32>}, {pipeline_mode = #tpu.pipeline_mode<synchronous>, transform_indices = @transform_3, window_bounds = array<i64: 32, 128>}, {pipeline_mode = #tpu.pipeline_mode<synchronous>, transform_indices = @transform_4, window_bounds = array<i64: 1, 128>}, {transform_indices = @transform_5, window_bounds = array<i64: 1, 16, 128>}]} {
    %c0 = arith.constant 0 : index
    %c0_0 = arith.constant 0 : index
    %c0_1 = arith.constant 0 : index
    %0 = vector.load %arg2[%c0, %c0_0, %c0_1] : memref<1x16x32xbf16, #tpu.memory_space<vmem>>, vector<1x16x32xbf16>
    %1 = vector.shape_cast %0 : vector<1x16x32xbf16> to vector<16x32xbf16>
    %2 = arith.extf %1 : vector<16x32xbf16> to vector<16x32xf32>
    %3 = tpu.iota {dimensions = array<i32: 0>} : vector<16x1xi32>
    %c16_i32 = arith.constant 16 : i32
    %4 = arith.muli %arg0, %c16_i32 : i32
    %5 = vector.broadcast %4 : i32 to vector<16x1xi32>
    %6 = arith.addi %3, %5 : vector<16x1xi32>
    %c24_i32 = arith.constant 24 : i32
    %7 = vector.broadcast %c24_i32 : i32 to vector<16x1xi32>
    %8 = arith.cmpi slt, %6, %7 : vector<16x1xi32>
    %cst = arith.constant 0.000000e+00 : f32
    %9 = vector.shape_cast %8 : vector<16x1xi1> to vector<16x1xi1>
    %10 = vector.broadcast %9 : vector<16x1xi1> to vector<16x32xi1>
    %11 = vector.broadcast %cst : f32 to vector<16x32xf32>
    %12 = arith.select %10, %2, %11 : vector<16x32xi1>, vector<16x32xf32>
    %cst_2 = arith.constant dense<0.000000e+00> : vector<16xf32>
    %13 = vector.multi_reduction <add>, %12, %cst_2 [1] : vector<16x32xf32> to vector<16xf32>
    %14 = vector.shape_cast %13 : vector<16xf32> to vector<16x1xf32>
    %cst_3 = arith.constant 3.125000e-02 : f32
    %15 = vector.broadcast %cst_3 : f32 to vector<16x1xf32>
    %16 = arith.mulf %14, %15 : vector<16x1xf32>
    %17 = arith.mulf %12, %12 : vector<16x32xf32>
    %cst_4 = arith.constant dense<0.000000e+00> : vector<16xf32>
    %18 = vector.multi_reduction <add>, %17, %cst_4 [1] : vector<16x32xf32> to vector<16xf32>
    %19 = vector.shape_cast %18 : vector<16xf32> to vector<16x1xf32>
    %cst_5 = arith.constant 3.125000e-02 : f32
    %20 = vector.broadcast %cst_5 : f32 to vector<16x1xf32>
    %21 = arith.mulf %19, %20 : vector<16x1xf32>
    %22 = arith.mulf %16, %16 : vector<16x1xf32>
    %23 = arith.subf %21, %22 : vector<16x1xf32>
    %cst_6 = arith.constant 0.000000e+00 : f32
    %24 = vector.broadcast %cst_6 : f32 to vector<16x1xf32>
    %25 = arith.maximumf %23, %24 : vector<16x1xf32>
    %cst_7 = arith.constant 9.99999997E-7 : f32
    %26 = vector.broadcast %cst_7 : f32 to vector<16x1xf32>
    %27 = arith.addf %25, %26 : vector<16x1xf32>
    %28 = math.rsqrt %27 : vector<16x1xf32>
    %c0_8 = arith.constant 0 : index
    %c0_9 = arith.constant 0 : index
    %c0_10 = arith.constant 0 : index
    %29 = vector.load %arg3[%c0_8, %c0_9, %c0_10] : memref<1x1x32xf32, #tpu.memory_space<vmem>>, vector<1x1x32xf32>
    %30 = vector.shape_cast %29 : vector<1x1x32xf32> to vector<1x32xf32>
    %c0_11 = arith.constant 0 : index
    %c0_12 = arith.constant 0 : index
    %c0_13 = arith.constant 0 : index
    %31 = vector.load %arg4[%c0_11, %c0_12, %c0_13] : memref<1x2x32xf32, #tpu.memory_space<vmem>>, vector<1x2x32xf32>
    %32 = vector.shape_cast %31 : vector<1x2x32xf32> to vector<2x32xf32>
    %33 = vector.extract_strided_slice %32 {offsets = [0, 0], sizes = [1, 32], strides = [1, 1]} : vector<2x32xf32> to vector<1x32xf32>
    %34 = arith.addf %33, %30 : vector<1x32xf32>
    %35 = vector.extract_strided_slice %32 {offsets = [1, 0], sizes = [1, 32], strides = [1, 1]} : vector<2x32xf32> to vector<1x32xf32>
    %36 = arith.addf %35, %30 : vector<1x32xf32>
    %37 = vector.broadcast %16 : vector<16x1xf32> to vector<16x32xf32>
    %38 = arith.subf %12, %37 : vector<16x32xf32>
    %cst_14 = arith.constant 1.000000e+00 : f32
    %39 = vector.broadcast %cst_14 : f32 to vector<1x32xf32>
    %40 = arith.addf %39, %36 : vector<1x32xf32>
    %41 = vector.broadcast %28 : vector<16x1xf32> to vector<16x32xf32>
    %42 = vector.broadcast %40 : vector<1x32xf32> to vector<16x32xf32>
    %43 = arith.mulf %41, %42 : vector<16x32xf32>
    %44 = arith.mulf %38, %43 : vector<16x32xf32>
    %45 = vector.broadcast %34 : vector<1x32xf32> to vector<16x32xf32>
    %46 = arith.addf %44, %45 : vector<16x32xf32>
    %47 = arith.truncf %46 : vector<16x32xf32> to vector<16x32xbf16>
    %c0_15 = arith.constant 0 : index
    %c0_16 = arith.constant 0 : index
    %48 = vector.load %arg5[%c0_15, %c0_16] : memref<32x128xbf16, #tpu.memory_space<vmem>>, vector<32x128xbf16>
    %cst_17 = arith.constant dense<0.000000e+00> : vector<16x128xf32>
    %49 = tpu.matmul %47, %48, %cst_17 {dimension_numbers = #tpu.dot_dimension_numbers<[1], [0], [0], [1], [0, 0, 1, 1], [], []>} : vector<16x32xbf16>, vector<32x128xbf16>, vector<16x128xf32> -> vector<16x128xf32>
    %c0_18 = arith.constant 0 : index
    %c0_19 = arith.constant 0 : index
    %50 = vector.load %arg6[%c0_18, %c0_19] : memref<1x128xf32, #tpu.memory_space<vmem>>, vector<1x128xf32>
    %51 = vector.broadcast %50 : vector<1x128xf32> to vector<16x128xf32>
    %52 = arith.addf %49, %51 : vector<16x128xf32>
    %53 = arith.truncf %52 : vector<16x128xf32> to vector<16x128xbf16>
    %c0_20 = arith.constant 0 : index
    %c0_21 = arith.constant 0 : index
    %c0_22 = arith.constant 0 : index
    %54 = vector.load %arg7[%c0_20, %c0_21, %c0_22] : memref<1x16x128xbf16, #tpu.memory_space<vmem>>, vector<1x16x128xbf16>
    %55 = vector.shape_cast %54 : vector<1x16x128xbf16> to vector<16x128xbf16>
    %56 = vector.shape_cast %53 : vector<16x128xbf16> to vector<1x16x128xbf16>
    tpu.vector_store %arg7[%c0_20, %c0_21, %c0_22], %56 {strides = array<i32>} : memref<1x16x128xbf16, #tpu.memory_space<vmem>>, vector<1x16x128xbf16>,
    return
  }
  func.func @transform_0(%arg0: i32, %arg1: i32) -> (i32, i32, i32) {
    %c0_i32 = arith.constant 0 : i32
    %c0_i32_0 = arith.constant 0 : i32
    return %arg1, %arg0, %c0_i32 : i32, i32, i32
  }
  func.func @transform_1(%arg0: i32, %arg1: i32) -> (i32, i32, i32) {
    %c0_i32 = arith.constant 0 : i32
    %c0_i32_0 = arith.constant 0 : i32
    %c0_i32_1 = arith.constant 0 : i32
    return %arg1, %c0_i32, %c0_i32_0 : i32, i32, i32
  }
  func.func @transform_2(%arg0: i32, %arg1: i32) -> (i32, i32, i32) {
    %c0_i32 = arith.constant 0 : i32
    %c0_i32_0 = arith.constant 0 : i32
    %c0_i32_1 = arith.constant 0 : i32
    %c0_i32_2 = arith.constant 0 : i32
    return %c0_i32, %c0_i32_0, %c0_i32_1 : i32, i32, i32
  }
  func.func @transform_3(%arg0: i32, %arg1: i32) -> (i32, i32) {
    %c0_i32 = arith.constant 0 : i32
    %c0_i32_0 = arith.constant 0 : i32
    %c0_i32_1 = arith.constant 0 : i32
    return %c0_i32, %c0_i32_0 : i32, i32
  }
  func.func @transform_4(%arg0: i32, %arg1: i32) -> (i32, i32) {
    %c0_i32 = arith.constant 0 : i32
    %c0_i32_0 = arith.constant 0 : i32
    %c0_i32_1 = arith.constant 0 : i32
    return %c0_i32, %c0_i32_0 : i32, i32
  }
  func.func @transform_5(%arg0: i32, %arg1: i32) -> (i32, i32, i32) {
    %c0_i32 = arith.constant 0 : i32
    %c0_i32_0 = arith.constant 0 : i32
    return %arg1, %arg0, %c0_i32 : i32, i32, i32
  }
}

</mosaic_0001>

<llo_original>
// kernel: tpu_custom_call.1
$region0: #{tpu_custom_call.1}
  #allocation0 [shape = 'u32[]', space=smem, size = 0x4, offset = 0x4, fixed_abs, tag = 'smem constant byte address 0x4 - core index']
  #allocation1 [shape = 'u32[144,128]{1,0:T(1,128)}', space=vmem, size = 0x12000, scoped, tag = 'internal scratch']
  %s0 = inlined_call_operand.hbm [shape: bf16[2,24,32], index: 0, kind: input, shape index: {}]
  %s1 = inlined_call_operand.hbm [shape: f32[2,1,32], index: 1, kind: input, shape index: {}]
  %s2 = inlined_call_operand.hbm [shape: f32[1,2,32], index: 2, kind: input, shape index: {}]
  %s3 = inlined_call_operand.hbm [shape: bf16[32,128], index: 3, kind: input, shape index: {}]
  %s4 = inlined_call_operand.hbm [shape: f32[1,128], index: 4, kind: input, shape index: {}]
  %s5 = inlined_call_operand.hbm [shape: bf16[2,24,128], index: 5, kind: output, shape index: {}]
  %s6 = sld [smem:[#allocation0]]
  $region73: #{tpu_custom_call.1} parent=0
    _
  %s8 = ssub.s32 1, %s6
  %s9 = scalar_select 0, %s8, %s6
  $region1: #{tpu_custom_call.1} parent=0
    #allocation2 [shape = 'u8[8192]{0}', space=vmem, size = 0x2000, scoped, tag = 'input window, operand 0']
    #allocation3 [shape = 's32[2]{0}', space=sflag, size = 0x8, scoped, tag = 'scoped memory for tpu_custom_call.1']
    #allocation4 [shape = 's32[2]{0}', space=sflag, size = 0x8, scoped, tag = 'scoped memory for tpu_custom_call.1']
    #allocation5 [shape = 'u8[1024]{0}', space=vmem, size = 0x400, scoped, tag = 'input window, operand 1']
    #allocation6 [shape = 's32[2]{0}', space=sflag, size = 0x8, scoped, tag = 'scoped memory for tpu_custom_call.1']
    #allocation7 [shape = 'u8[1024]{0}', space=vmem, size = 0x400, scoped, tag = 'input window, operand 2, single buffered']
    #allocation8 [shape = 'u8[8192]{0}', space=vmem, size = 0x2000, scoped, tag = 'input window, operand 3, single buffered']
    #allocation9 [shape = 's32[1]{0}', space=sflag, size = 0x4, scoped, tag = 'scoped memory for tpu_custom_call.1']
    #allocation10 [shape = 'u8[512]{0}', space=vmem, size = 0x400, scoped, tag = 'input window, operand 4, single buffered']
    #allocation11 [shape = 'u8[8192]{0}', space=vmem, size = 0x2000, scoped, tag = 'output window, operand 0']
    %10 = vsyncpa [#allocation3], 0
    %s11 = scalar_lea.sflag [#allocation3], 1
    %12 = vsyncpa %s11, 0
    %13 = vsyncpa [#allocation6], 0
    %s14 = scalar_lea.sflag [#allocation6], 1
    %15 = vsyncpa %s14, 0
    %16 = vsyncpa [#allocation9], 0
    %17 = vsyncpa [#allocation4], 0
    %s18 = scalar_lea.sflag [#allocation4], 1
    %19 = vsyncpa %s18, 0
    loop: start=0, step=1, limit=6
    $region2: #{tpu_custom_call.1} parent=1 // loop_pre_header
      _
    $region3: #{tpu_custom_call.1} parent=1 // loop_header
      %s21 = sphi 0, %s25
      %p22 = scmp.ge.s32.totalorder %s21, 6
      %s28 = sphi 0, %s40
      %s29 = sphi 0, %s36
      %s30 = sphi 0, %s28
      %s31 = sphi 0, %s29
      %s32 = sphi 0, %s30
      %s33 = sphi 0, %s31
      %s45 = sphi 0, %s47
      %s48 = sphi 0, %s45
      %s49 = sphi 0, %s48
      %s65 = sphi 0, %s49
      %s71 = sphi 0, %s73
      %s74 = sphi 0, %s71
      %s75 = sphi 0, %s74
      %s91 = sphi 0, %s75
      %s95 = sphi 0, %s95
      %s97 = sphi 0, %s95
      %s98 = sphi 0, %s97
      %s112 = sphi 0, %s98
      %s116 = sphi 0, %s116
      %s118 = sphi 0, %s116
      %s119 = sphi 0, %s118
      %s133 = sphi 0, %s119
      %s137 = sphi 0, %s137
      %s139 = sphi 0, %s137
      %s140 = sphi 0, %s139
      %s154 = sphi 0, %s140
      %s162 = sphi 0, %s164
      %s165 = sphi 0, %s162
      %s166 = sphi 0, %s165
      %s182 = sphi 0, %s166
    $region4: #{tpu_custom_call.1} parent=1 // loop_header_branch
      %24 = sbr.rel (%p22) target = $region8
    $region5: #{tpu_custom_call.1} parent=1 // loop_body
      %s26 = ssub.s32 %s21, 1
      %s27 = ssub.s32 %s21, 2
      %s34 = sadd.s32 1, %s29
      %p35 = scmp.ge.s32.totalorder %s34, 2
      %s36 = scalar_select %p35, 0, %s34
      %s37 = sadd.s32 1, %s28
      %s38 = scalar_select %p35, %s37, %s28
      %p39 = scmp.ge.s32.totalorder %s38, 2
      %s40 = scalar_select %p39, 0, %s38
      %s41 = ssub.s32 %s29, %s36
      %s42 = ssub.s32 %s28, %s40
      %s43 = sor.u32 %s41, %s42
      %p44 = scmp.eq.s32.totalorder %s43, 0
      %s46 = sadd.s32 %s45, 1
      %s47 = scalar_select %p44, %s45, %s46
      %p50 = pneg %p44
      %p51 = scmp.eq.s32.totalorder %s21, 3
      %p52 = por %p50, %p51
      %p53 = scmp.ne.s32.totalorder %s45, %s48
      %p54 = scmp.eq.s32.totalorder %s21, 0
      %p55 = por %p53, %p54
      %p56 = scmp.ne.s32.totalorder %s45, %s48
      %p57 = scmp.eq.s32.totalorder %s26, 3
      %p58 = por %p56, %p57
      %p59 = scmp.ne.s32.totalorder %s48, %s49
      %p60 = scmp.eq.s32.totalorder %s26, 0
      %p61 = por %p59, %p60
      %p62 = scmp.ne.s32.totalorder %s48, %s49
      %p63 = scmp.eq.s32.totalorder %s27, 3
      %p64 = por %p62, %p63
      %p66 = scmp.ne.s32.totalorder %s49, %s65
      %p67 = scmp.eq.s32.totalorder %s27, 0
      %p68 = por %p66, %p67
      %s69 = ssub.s32 %s29, %s36
      %p70 = scmp.eq.s32.totalorder %s69, 0
      %s72 = sadd.s32 %s71, 1
      %s73 = scalar_select %p70, %s71, %s72
      %p76 = pneg %p70
      %p77 = scmp.eq.s32.totalorder %s21, 3
      %p78 = por %p76, %p77
      %p79 = scmp.ne.s32.totalorder %s71, %s74
      %p80 = scmp.eq.s32.totalorder %s21, 0
      %p81 = por %p79, %p80
      %p82 = scmp.ne.s32.totalorder %s71, %s74
      %p83 = scmp.eq.s32.totalorder %s26, 3
      %p84 = por %p82, %p83
      %p85 = scmp.ne.s32.totalorder %s74, %s75
      %p86 = scmp.eq.s32.totalorder %s26, 0
      %p87 = por %p85, %p86
      %p88 = scmp.ne.s32.totalorder %s74, %s75
      %p89 = scmp.eq.s32.totalorder %s27, 3
      %p90 = por %p88, %p89
      %p92 = scmp.ne.s32.totalorder %s75, %s91
      %p93 = scmp.eq.s32.totalorder %s27, 0
      %p94 = por %p92, %p93
      %s96 = sadd.s32 %s95, 1
      %p99 = scmp.eq.s32.totalorder %s21, 3
      %p100 = scmp.ne.s32.totalorder %s95, %s97
      %p101 = scmp.eq.s32.totalorder %s21, 0
      %p102 = por %p100, %p101
      %p103 = scmp.ne.s32.totalorder %s95, %s97
      %p104 = scmp.eq.s32.totalorder %s26, 3
      %p105 = por %p103, %p104
      %p106 = scmp.ne.s32.totalorder %s97, %s98
      %p107 = scmp.eq.s32.totalorder %s26, 0
      %p108 = por %p106, %p107
      %p109 = scmp.ne.s32.totalorder %s97, %s98
      %p110 = scmp.eq.s32.totalorder %s27, 3
      %p111 = por %p109, %p110
      %p113 = scmp.ne.s32.totalorder %s98, %s112
      %p114 = scmp.eq.s32.totalorder %s27, 0
      %p115 = por %p113, %p114
      %s117 = sadd.s32 %s116, 1
      %p120 = scmp.eq.s32.totalorder %s21, 3
      %p121 = scmp.ne.s32.totalorder %s116, %s118
      %p122 = scmp.eq.s32.totalorder %s21, 0
      %p123 = por %p121, %p122
      %p124 = scmp.ne.s32.totalorder %s116, %s118
      %p125 = scmp.eq.s32.totalorder %s26, 3
      %p126 = por %p124, %p125
      %p127 = scmp.ne.s32.totalorder %s118, %s119
      %p128 = scmp.eq.s32.totalorder %s26, 0
      %p129 = por %p127, %p128
      %p130 = scmp.ne.s32.totalorder %s118, %s119
      %p131 = scmp.eq.s32.totalorder %s27, 3
      %p132 = por %p130, %p131
      %p134 = scmp.ne.s32.totalorder %s119, %s133
      %p135 = scmp.eq.s32.totalorder %s27, 0
      %p136 = por %p134, %p135
      %s138 = sadd.s32 %s137, 1
      %p141 = scmp.eq.s32.totalorder %s21, 3
      %p142 = scmp.ne.s32.totalorder %s137, %s139
      %p143 = scmp.eq.s32.totalorder %s21, 0
      %p144 = por %p142, %p143
      %p145 = scmp.ne.s32.totalorder %s137, %s139
      %p146 = scmp.eq.s32.totalorder %s26, 3
      %p147 = por %p145, %p146
      %p148 = scmp.ne.s32.totalorder %s139, %s140
      %p149 = scmp.eq.s32.totalorder %s26, 0
      %p150 = por %p148, %p149
      %p151 = scmp.ne.s32.totalorder %s139, %s140
      %p152 = scmp.eq.s32.totalorder %s27, 3
      %p153 = por %p151, %p152
      %p155 = scmp.ne.s32.totalorder %s140, %s154
      %p156 = scmp.eq.s32.totalorder %s27, 0
      %p157 = por %p155, %p156
      %s158 = ssub.s32 %s29, %s36
      %s159 = ssub.s32 %s28, %s40
      %s160 = sor.u32 %s158, %s159
      %p161 = scmp.eq.s32.totalorder %s160, 0
      %s163 = sadd.s32 %s162, 1
      %s164 = scalar_select %p161, %s162, %s163
      %p167 = pneg %p161
      %p168 = scmp.eq.s32.totalorder %s21, 3
      %p169 = por %p167, %p168
      %p170 = scmp.ne.s32.totalorder %s162, %s165
      %p171 = scmp.eq.s32.totalorder %s21, 0
      %p172 = por %p170, %p171
      %p173 = scmp.ne.s32.totalorder %s162, %s165
      %p174 = scmp.eq.s32.totalorder %s26, 3
      %p175 = por %p173, %p174
      %p176 = scmp.ne.s32.totalorder %s165, %s166
      %p177 = scmp.eq.s32.totalorder %s26, 0
      %p178 = por %p176, %p177
      %p179 = scmp.ne.s32.totalorder %s165, %s166
      %p180 = scmp.eq.s32.totalorder %s27, 3
      %p181 = por %p179, %p180
      %p183 = scmp.ne.s32.totalorder %s166, %s182
      %p184 = scmp.eq.s32.totalorder %s27, 0
      %p185 = por %p183, %p184
      %p186 = scmp.le.s32.totalorder 1, %s21
      %p187 = scmp.lt.s32.totalorder %s21, 5
      %p188 = pnand %p186, %p187
      %p189 = pneg %p188
      // Predicated region
      $region9: #{tpu_custom_call.1} parent=5 // pred_check
        _
      $region10: #{tpu_custom_call.1} parent=5 // pred_check_branch
        %191 = sbr.rel (%p188) target = $region12
      $region11: #{tpu_custom_call.1} parent=5 // pred_region
        %s192 = ssub.s32 %s21, 1
        // Predicated region
        $region13: #{tpu_custom_call.1} parent=11 // pred_check
          %p193 = pneg %p108
        $region14: #{tpu_custom_call.1} parent=11 // pred_check_branch
          %195 = sbr.rel (%p193) target = $region16
        $region15: #{tpu_custom_call.1} parent=11 // pred_region
          %s197 = ssub.s32 32, 32
          %198 = vsyncadd [#allocation6], %s197
          %s200 = sshll.u32 [#allocation7], 4
          %s201 = int_to_ptr.vmem [resolvable:$true] %s200
          %203 = dma.hbm_to_vmem [thread:$0]  %s2, 32, %s201, [#allocation6]
        $region16: #{tpu_custom_call.1} parent=11 // pred_fallthru
          _
        // Predicated region
        $region17: #{tpu_custom_call.1} parent=11 // pred_check
          %p204 = pneg %p129
        $region18: #{tpu_custom_call.1} parent=11 // pred_check_branch
          %206 = sbr.rel (%p204) target = $region20
        $region19: #{tpu_custom_call.1} parent=11 // pred_region
          %s208 = ssub.s32 256, 256
          %209 = vsyncadd [#allocation9], %s208
          %s210 = sshll.u32 [#allocation8], 4
          %s211 = int_to_ptr.vmem [resolvable:$true] %s210
          %216 = dma.hbm_to_vmem [thread:$0]  %s3, 256, %s211, [#allocation9], 64, 64, 4
        $region20: #{tpu_custom_call.1} parent=11 // pred_fallthru
          _
        // Predicated region
        $region21: #{tpu_custom_call.1} parent=11 // pred_check
          %p217 = pneg %p150
        $region22: #{tpu_custom_call.1} parent=11 // pred_check_branch
          %219 = sbr.rel (%p217) target = $region24
        $region23: #{tpu_custom_call.1} parent=11 // pred_region
          %s221 = ssub.s32 16, 16
          %222 = vsyncadd [#allocation9], %s221
          %s224 = sshll.u32 [#allocation10], 4
          %s225 = int_to_ptr.vmem [resolvable:$true] %s224
          %227 = dma.hbm_to_vmem [thread:$0]  %s4, 16, %s225, [#allocation9]
        $region24: #{tpu_custom_call.1} parent=11 // pred_fallthru
          _
      $region12: #{tpu_custom_call.1} parent=5 // pred_fallthru
        _
      %p228 = scmp.lt.s32.totalorder %s21, 4
      // Predicated region
      $region25: #{tpu_custom_call.1} parent=5 // pred_check
        %p229 = pneg %p228
      $region26: #{tpu_custom_call.1} parent=5 // pred_check_branch
        %231 = sbr.rel (%p229) target = $region28
      $region27: #{tpu_custom_call.1} parent=5 // pred_region
        // Predicated region
        $region29: #{tpu_custom_call.1} parent=27 // pred_check
          %p232 = pneg %p55
        $region30: #{tpu_custom_call.1} parent=27 // pred_check_branch
          %234 = sbr.rel (%p232) target = $region32
        $region31: #{tpu_custom_call.1} parent=27 // pred_region
          %s235 = sand.u32 %s45, 1
          %s236 = scalar_lea.sflag [#allocation3], %s235
          %s237 = sand.u32 %s45, 1
          %s238 = smul.addr %s237, 8
          %s239 = scalar_lea.vmem [#allocation2], %s238
          %s240 = smul.u32 2, %s28
          %s241 = ssub.s32 3, %s240
          %p242 = scmp.lt.s32.totalorder %s241, 2
          %s243 = scalar_select %p242, %s241, 2
          %s244 = smul.u32 64, %s243
          %s246 = ssub.s32 128, %s244
          %247 = vsyncadd %s236, %s246
          %p248 = scmp.ne.s32.totalorder 0, %s244
          %s249 = smul.addr %s29, 3
          %s250 = sadd.s32 %s240, %s249
          %s251 = smul.addr %s250, 64
          %s252 = scalar_lea.hbm %s0, %s251
          %s253 = smul.u32 4, %s243
          %s254 = sshll.u32 %s239, 4
          %s255 = int_to_ptr.vmem [resolvable:$true] %s254
          %s256 = sshll.u32 %s253, 4
          %260 = dma.hbm_to_vmem [thread:$0]  (%p248), %s252, %s256, %s255, %s236, 64, 64, 4
        $region32: #{tpu_custom_call.1} parent=27 // pred_fallthru
          _
        // Predicated region
        $region33: #{tpu_custom_call.1} parent=27 // pred_check
          %p261 = pneg %p81
        $region34: #{tpu_custom_call.1} parent=27 // pred_check_branch
          %263 = sbr.rel (%p261) target = $region36
        $region35: #{tpu_custom_call.1} parent=27 // pred_region
          %s264 = sand.u32 %s21, 1
          %s265 = scalar_lea.sflag [#allocation6], %s264
          %s266 = sand.u32 %s71, 1
          %s267 = scalar_lea.vmem [#allocation5], %s266
          %s269 = ssub.s32 16, 16
          %270 = vsyncadd %s265, %s269
          %s271 = smul.addr %s29, 16
          %s272 = scalar_lea.hbm %s1, %s271
          %s274 = sshll.u32 %s267, 4
          %s275 = int_to_ptr.vmem [resolvable:$true] %s274
          %277 = dma.hbm_to_vmem [thread:$0]  %s272, 16, %s275, %s265
        $region36: #{tpu_custom_call.1} parent=27 // pred_fallthru
          _
      $region28: #{tpu_custom_call.1} parent=5 // pred_fallthru
        _
      %p278 = scmp.le.s32.totalorder 1, %s21
      %p279 = scmp.lt.s32.totalorder %s21, 5
      %p280 = pnand %p278, %p279
      %p281 = pneg %p280
      // Predicated region
      $region37: #{tpu_custom_call.1} parent=5 // pred_check
        _
      $region38: #{tpu_custom_call.1} parent=5 // pred_check_branch
        %283 = sbr.rel (%p280) target = $region40
      $region39: #{tpu_custom_call.1} parent=5 // pred_region
        %s284 = ssub.s32 %s21, 1
        %s285 = sand.u32 %s48, 1
        %s286 = scalar_lea.sflag [#allocation3], %s285
        %s287 = sand.u32 %s48, 1
        %s288 = smul.addr %s287, 8
        %s289 = scalar_lea.vmem [#allocation2], %s288
        // Predicated region
        $region41: #{tpu_custom_call.1} parent=39 // pred_check
          %p290 = pneg %p61
        $region42: #{tpu_custom_call.1} parent=39 // pred_check_branch
          %292 = sbr.rel (%p290) target = $region44
        $region43: #{tpu_custom_call.1} parent=39 // pred_region
          %293 = dma.done %s286, 128
        $region44: #{tpu_custom_call.1} parent=39 // pred_fallthru
          _
        %s294 = sand.u32 %s26, 1
        %s295 = scalar_lea.sflag [#allocation6], %s294
        %s296 = sand.u32 %s74, 1
        %s297 = scalar_lea.vmem [#allocation5], %s296
        // Predicated region
        $region45: #{tpu_custom_call.1} parent=39 // pred_check
          %p298 = pneg %p87
        $region46: #{tpu_custom_call.1} parent=39 // pred_check_branch
          %300 = sbr.rel (%p298) target = $region48
        $region47: #{tpu_custom_call.1} parent=39 // pred_region
          %301 = dma.done %s295, 16
        $region48: #{tpu_custom_call.1} parent=39 // pred_fallthru
          _
        // Predicated region
        $region49: #{tpu_custom_call.1} parent=39 // pred_check
          %p302 = pneg %p108
        $region50: #{tpu_custom_call.1} parent=39 // pred_check_branch
          %304 = sbr.rel (%p302) target = $region52
        $region51: #{tpu_custom_call.1} parent=39 // pred_region
          %305 = dma.done [#allocation6], 32
        $region52: #{tpu_custom_call.1} parent=39 // pred_fallthru
          _
        // Predicated region
        $region53: #{tpu_custom_call.1} parent=39 // pred_check
          %p306 = pneg %p129
        $region54: #{tpu_custom_call.1} parent=39 // pred_check_branch
          %308 = sbr.rel (%p306) target = $region56
        $region55: #{tpu_custom_call.1} parent=39 // pred_region
          %309 = dma.done [#allocation9], 256
        $region56: #{tpu_custom_call.1} parent=39 // pred_fallthru
          _
        // Predicated region
        $region57: #{tpu_custom_call.1} parent=39 // pred_check
          %p310 = pneg %p150
        $region58: #{tpu_custom_call.1} parent=39 // pred_check_branch
          %312 = sbr.rel (%p310) target = $region60
        $region59: #{tpu_custom_call.1} parent=39 // pred_region
          %313 = dma.done [#allocation9], 16
        $region60: #{tpu_custom_call.1} parent=39 // pred_fallthru
          _
        %s314 = sand.u32 %s48, 1
        %s315 = scalar_lea.sflag [#allocation3], %s314
        %s316 = sand.u32 %s48, 1
        %s317 = smul.addr %s316, 8
        %s318 = scalar_lea.vmem [#allocation2], %s317
        %p319 = pneg %p61
        %p320 = pneg %p58
        %s321 = sand.u32 %s26, 1
        %s322 = scalar_lea.sflag [#allocation6], %s321
        %s323 = sand.u32 %s74, 1
        %s324 = scalar_lea.vmem [#allocation5], %s323
        %p325 = pneg %p87
        %p326 = pneg %p84
        %p327 = pneg %p108
        %p328 = pneg %p105
        %p329 = pneg %p129
        %p330 = pneg %p126
        %p331 = pneg %p150
        %p332 = pneg %p147
        %p333 = pneg %p178
        %p334 = pneg %p175
        %s335 = sand.u32 %s165, 1
        %s336 = scalar_lea.sflag [#allocation4], %s335
        %s337 = sand.u32 %s165, 1
        %s338 = smul.addr %s337, 8
        %s339 = scalar_lea.vmem [#allocation11], %s338
        %s340 = smul.u32 2, %s30
        %s341 = ssub.s32 3, %s340
        %p342 = scmp.lt.s32.totalorder %s341, 2
        %s343 = scalar_select %p342, %s341, 2
        %s344 = smul.u32 64, %s343
        %s345 = smul.u32 2, %s30
        %s346 = ssub.s32 3, %s345
        %p347 = scmp.lt.s32.totalorder %s346, 2
        %s348 = scalar_select %p347, %s346, 2
        %s349 = smul.u32 64, %s348
        %v351 = vld [vmem:[%s289] sm:$0xf]
        %v352 = vld [vmem:[%s289 + $0x4] sm:$0xf]
        %v353 = vunpack.c.l.bf16 %v351
        %v354 = vunpack.c.l.bf16 %v352
        %v355 = vlaneseq
        %v356 = vshrl.u32 %v355, 7
        %v357 = vadd.s32 %v356, 8
        %s358 = smul.u32 %s30, 16
        %v359 = vstv %s358
        %v360 = vadd.s32 %v356, %v359
        %v361 = vadd.s32 %v357, %v359
        %vm362 = vcmp.lt.s32.totalorder %v360, 24
        %vm363 = vcmp.lt.s32.totalorder %v361, 24
        %v364 = vsel %vm362, 1, 0
        %v365 = vsel %vm363, 1, 0
        %vm366 = vcmp.eq.s32.totalorder %v364, 1
        %vm367 = vcmp.eq.s32.totalorder %v365, 1
        %v368 = vsel %vm366, %v353, 0.0
        %v369 = vsel %vm367, %v354, 0.0
        %vm370 = vcmask 261120
        %v371 = vsel %vm370, %v368, 0.0
        %372 = vadd.xlane.f32.xlu0 %v371
        %v373 = vpop.xlane.xlu0 %372
        %v374 = vsel %vm370, %v369, 0.0
        %375 = vadd.xlane.f32.xlu0 %v374
        %v376 = vpop.xlane.xlu0 %375
        %v377 = vmul.f32 %v373, 0.03125
        %v378 = vmul.f32 %v376, 0.03125
        %v379 = vmul.f32 %v368, %v368
        %v380 = vmul.f32 %v369, %v369
        %v381 = vsel %vm370, %v379, 0.0
        %382 = vadd.xlane.f32.xlu0 %v381
        %v383 = vpop.xlane.xlu0 %382
        %v384 = vsel %vm370, %v380, 0.0
        %385 = vadd.xlane.f32.xlu0 %v384
        %v386 = vpop.xlane.xlu0 %385
        %v387 = vmul.f32 %v383, 0.03125
        %v388 = vmul.f32 %v386, 0.03125
        %v389 = vmul.f32 %v377, %v377
        %v390 = vmul.f32 %v378, %v378
        %v391 = vsub.f32 %v387, %v389
        %v392 = vsub.f32 %v388, %v390
        %v393 = vmax.f32 %v391, 0.0
        %v394 = vmax.f32 %v392, 0.0
        %v395 = vadd.f32 %v393, 1e-06
        %v396 = vadd.f32 %v394, 1e-06
        %v397 = vrsqrt.pop %v395
        %v398 = vrsqrt.pop %v396
        %v399 = vld [vmem:[%s297] sm:$0x1]
        %v400 = vld [vmem:[#allocation7] sm:$0x3]
        %v401 = vadd.f32 %v400, %v399
        %v403 = vlaneseq
        %v404 = vshrl.u32 %v403, 7
        %v405 = vsub.s32 0, %v404
        %v406 = vrot.slane %v399, %v405
        %v408 = vadd.f32 %v400, %v406
        %v409 = vsub.f32 %v368, %v377
        %v410 = vsub.f32 %v369, %v378
        %v411 = vadd.f32 %v408, 1.0
        %v412 = vlaneseq
        %v413 = vshrl.u32 %v412, 7
        %v414 = vsub.s32 1, %v413
        %v415 = vrot.slane %v411, %v414
        %v416 = vmul.f32 %v397, %v415
        %v417 = vmul.f32 %v398, %v415
        %v418 = vmul.f32 %v409, %v416
        %v419 = vmul.f32 %v410, %v417
        %v420 = vlaneseq
        %v421 = vshrl.u32 %v420, 7
        %v422 = vsub.s32 0, %v421
        %v423 = vrot.slane %v401, %v422
        %v424 = vadd.f32 %v418, %v423
        %v425 = vadd.f32 %v419, %v423
        %v426 = vpack.c.bf16 %v425, %v424
        %v427 = vld [vmem:[#allocation8] sm:$0xf]
        %v428 = vld [vmem:[#allocation8 + $0x4] sm:$0xf]
        %v429 = vld [vmem:[#allocation8 + $0x8] sm:$0xf]
        %v430 = vld [vmem:[#allocation8 + $0xc] sm:$0xf]
        %v431 = vld [vmem:[#allocation10] sm:$0x1]
        %v433 = vlaneseq
        %v434 = vshrl.u32 %v433, 7
        %v435 = vsub.s32 0, %v434
        %v436 = vrot.slane %v431, %v435
        %v442 = vunpack.c.l.b16 %v427
        %v443 = vunpack.c.l.b16 %v428
        %v444 = vunpack.c.l.b16 %v429
        %v445 = vunpack.c.l.b16 %v430
        %v446 = vpack.c.b16 %v443, %v442
        %v447 = vpack.c.b16 %v445, %v444
        %v451 = vsel %vm370, %v426, 0
        %453 = vmatprep.subr.bf16.mxu0 0
        %454 = vmatpush1.bf16.msra.mxu0 %v446
        %455 = vmatprep.subr.bf16.mxu0 0
        %456 = vmatpush1.bf16.msra.mxu0 %v447
        %457 = vmatprep.subr.bf16.mxu0 0
        %458 = vmatpush1.bf16.msra.mxu0 0
        %459 = vmatprep.subr.bf16.mxu0 0
        %460 = vmatpush1.bf16.msra.mxu0 0
        %461 = vmatprep.subr.bf16.mxu0 0
        %462 = vmatpush1.bf16.msra.mxu0 0
        %463 = vmatprep.subr.bf16.mxu0 0
        %464 = vmatpush1.bf16.msra.mxu0 0
        %465 = vmatprep.subr.bf16.mxu0 0
        %466 = vmatpush1.bf16.msra.mxu0 0
        %467 = vmatprep.subr.bf16.mxu0 0
        %468 = vmatpush1.bf16.msra.mxu0 0
        %469 = vmatprep.subr.bf16.mxu0 0
        %470 = vmatpush1.bf16.msra.mxu0 0
        %471 = vmatprep.subr.bf16.mxu0 0
        %472 = vmatpush1.bf16.msra.mxu0 0
        %473 = vmatprep.subr.bf16.mxu0 0
        %474 = vmatpush1.bf16.msra.mxu0 0
        %475 = vmatprep.subr.bf16.mxu0 0
        %476 = vmatpush1.bf16.msra.mxu0 0
        %477 = vmatprep.subr.bf16.mxu0 0
        %478 = vmatpush1.bf16.msra.mxu0 0
        %479 = vmatprep.subr.bf16.mxu0 0
        %480 = vmatpush1.bf16.msra.mxu0 0
        %481 = vmatprep.subr.bf16.mxu0 0
        %482 = vmatpush1.bf16.msra.mxu0 0
        %483 = vmatprep.subr.bf16.mxu0 0
        %484 = vmatpush1.bf16.msra.mxu0 0
        %485 = vmatprep.mubr.bf16.mxu0 0
        %486 = vmatmul.mubr.bf16.gmra.mrb[0].mxu0 %v451
        %v487 = vpop.f32.mrb[0].mxu0
        %v488 = vadd.f32 %v436, %v487
        %v489 = vpop.f32.mrb[0].mxu0
        %v490 = vpop.f32.mrb[0].mxu0
        %v491 = vadd.f32 %v436, %v490
        %v492 = vpop.f32.mrb[0].mxu0
        %493 = vdwg.mxu0
        %v494 = vpack.c.bf16 %v491, %v488
        %v496 = vunpack.c.l.b16 %v494
        %v497 = vunpack.c.h.b16 %v494
        %v498 = vpack.c.b16 %v496, %v496
        %v499 = vpack.c.b16 %v497, %v497
        %502 = vst [vmem:[%s339] sm:$0xf] %v498
        %503 = vst [vmem:[%s339 + $0x4] sm:$0xf] %v499
        %s504 = sand.u32 %s165, 1
        %s505 = scalar_lea.sflag [#allocation4], %s504
        %s506 = sand.u32 %s165, 1
        %s507 = smul.addr %s506, 8
        %s508 = scalar_lea.vmem [#allocation11], %s507
        // Predicated region
        $region61: #{tpu_custom_call.1} parent=39 // pred_check
          %p509 = pneg %p175
        $region62: #{tpu_custom_call.1} parent=39 // pred_check_branch
          %511 = sbr.rel (%p509) target = $region64
        $region63: #{tpu_custom_call.1} parent=39 // pred_region
          %s512 = smul.u32 2, %s30
          %s513 = ssub.s32 3, %s512
          %p514 = scmp.lt.s32.totalorder %s513, 2
          %s515 = scalar_select %p514, %s513, 2
          %s516 = smul.u32 64, %s515
          %s518 = ssub.s32 128, %s516
          %519 = vsyncadd %s505, %s518
          %p520 = scmp.ne.s32.totalorder 0, %s516
          %s521 = smul.addr %s31, 3
          %s522 = sadd.s32 %s512, %s521
          %s523 = smul.addr %s522, 64
          %s524 = scalar_lea.hbm %s5, %s523
          %s525 = smul.u32 4, %s515
          %s526 = sshll.u32 %s508, 4
          %s527 = int_to_ptr.vmem [resolvable:$true] %s526
          %s528 = sshll.u32 %s525, 4
          %532 = dma.vmem_to_hbm [thread:$0]  (%p520), %s527, %s528, %s524, %s505, 64, 64, 4
        $region64: #{tpu_custom_call.1} parent=39 // pred_fallthru
          _
      $region40: #{tpu_custom_call.1} parent=5 // pred_fallthru
        _
      %p533 = scmp.le.s32.totalorder 2, %s21
      // Predicated region
      $region65: #{tpu_custom_call.1} parent=5 // pred_check
        %p534 = pneg %p533
      $region66: #{tpu_custom_call.1} parent=5 // pred_check_branch
        %536 = sbr.rel (%p534) target = $region68
      $region67: #{tpu_custom_call.1} parent=5 // pred_region
        %s537 = ssub.s32 %s21, 2
        // Predicated region
        $region69: #{tpu_custom_call.1} parent=67 // pred_check
          %p538 = pneg %p181
        $region70: #{tpu_custom_call.1} parent=67 // pred_check_branch
          %540 = sbr.rel (%p538) target = $region72
        $region71: #{tpu_custom_call.1} parent=67 // pred_region
          %s541 = sand.u32 %s166, 1
          %s542 = scalar_lea.sflag [#allocation4], %s541
          %s543 = sand.u32 %s166, 1
          %s544 = smul.addr %s543, 8
          %s545 = scalar_lea.vmem [#allocation11], %s544
          %546 = dma.done %s542, 128
        $region72: #{tpu_custom_call.1} parent=67 // pred_fallthru
          _
      $region68: #{tpu_custom_call.1} parent=5 // pred_fallthru
        _
    $region6: #{tpu_custom_call.1} parent=1 // loop_footer
      %s25 = sadd.s32 1, %s21
    $region7: #{tpu_custom_call.1} parent=1 // loop_footer_branch
      %20 = sbr.rel target = $region3
    $region8: #{tpu_custom_call.1} parent=1 // loop_exit
      _
    %547 = vsyncpa [#allocation3], 1
    %s548 = scalar_lea.sflag [#allocation3], 1
    %549 = vsyncpa %s548, 1
    %550 = vsyncpa [#allocation6], 1
    %s551 = scalar_lea.sflag [#allocation6], 1
    %552 = vsyncpa %s551, 1
    %553 = vsyncpa [#allocation9], 1
    %554 = vsyncpa [#allocation4], 1
    %s555 = scalar_lea.sflag [#allocation4], 1
    %556 = vsyncpa %s555, 1

</llo_original>
